<compile_context>
chip_gen: v7x
topology: tpu7x:2x2x1
jax: 0.10.0
libtpu: 0.0.40
codegen_flags: <defaults>
</compile_context>

<pallas_src>
import jax
import jax.numpy as jnp
from jax import lax
from jax.experimental import pallas as pl
from jax.experimental.pallas import tpu as pltpu


# ----------------------------- Pallas kernel ------------------------------- #
def _lmufft_kernel(x_ref, a_ref, wx_ref, scale_ref, shift_ref, o_ref):
    S = a_ref.shape[0]
    H = x_ref.shape[1]
    TB = o_ref.shape[0]

    xb = x_ref[...]                                                   # (TB*S, H) bf16

    # u = mean(x, dim=-1): per (batch, t) mean over hidden (f32 on the VPU).
    u = jnp.mean(xb.astype(jnp.float32).reshape(TB, S, H), axis=2)    # (TB, S)

    # Spectral branch (+ m-half of the conv), folded into parameter matrix A:
    #   hm[b, t*H + o] = sum_j u[b, j] * A[j, t*H + o]
    hm = jnp.dot(u, a_ref[...], preferred_element_type=jnp.float32)   # (TB, S*H)

    # x-half of the Conv1d as a single bf16 im2col matmul (3 tap partials).
    #   P[r, k*H + o] = sum_c x[r, c] * Wx[o, c, k]
    p = jnp.dot(xb, wx_ref[...], preferred_element_type=jnp.float32)  # (TB*S, 3H)
    p3 = p.reshape(TB, S, 3 * H)
    p_prev = p3[:, :, 0 * H:1 * H]     # tap k=0 -> uses x[t-1]
    p_here = p3[:, :, 1 * H:2 * H]     # tap k=1 -> uses x[t]
    p_next = p3[:, :, 2 * H:3 * H]     # tap k=2 -> uses x[t+1]
    zrow = jnp.zeros((TB, 1, H), jnp.float32)
    # Zero-padded +/-1 shifts along the per-batch seq axis == conv padding=1.
    hx3 = (p_here
           + jnp.concatenate([zrow, p_prev[:, :S - 1, :]], axis=1)
           + jnp.concatenate([p_next[:, 1:, :], zrow], axis=1))       # (TB, S, H)

    # Bridge to the lane-dense (TB, S*H) output layout (single minor concat).
    hx = jnp.concatenate([hx3[:, t, :] for t in range(S)], axis=1)    # (TB, S*H)

    # Conv bias + BatchNorm1d(seq_len) in eval mode, folded into scale/shift.
    h = (hm + hx) * scale_ref[...] + shift_ref[...]

    # ELU(alpha=1); clamp the exp argument so the unselected branch can't overflow.
    h = jnp.where(h > 0.0, h, jnp.exp(jnp.minimum(h, 0.0)) - 1.0)

    # TODO(synk): Dropout(p=0.5) is identity in eval mode.
    o_ref[...] = h.astype(o_ref.dtype)


# ------------------------------ wrapper (glue) ------------------------------ #
def _pick_batch_block(batch, seq):
    # Aim for >=256 rows of matmul work per grid step; the batch block must be
    # the full batch or a multiple of 8 so the (TB, S*H) output block satisfies
    # the (8, 128) BlockSpec rule.
    cands = [tb for tb in range(1, batch + 1)
             if batch % tb == 0 and (tb == batch or tb % 8 == 0)]
    for tb in cands:
        if tb * seq >= 256:
            return tb
    return cands[-1]


def lmufft_forward(x, weights_fft, conv_w, conv_b,
                   bn_gamma, bn_beta, bn_mean, bn_var, eps=1e-5):
    B, S, H = x.shape
    f32 = jnp.float32

    # ---- parameter-only glue transforms (done once per parameter set) ----
    wc = weights_fft[..., 0] + 1j * weights_fft[..., 1]            # (S//2+1, H)
    w_time = jnp.fft.irfft(wc, n=S, axis=0).astype(f32)            # (S, H)

    # circ[j, s, :] = w_time[(s - j) mod S]  (circular-convolution operator)
    idx = (jnp.arange(S)[None, :] - jnp.arange(S)[:, None]) % S    # (j, s)
    circ = w_time[idx]                                             # (S, S, H)
    circ_pad = jnp.pad(circ, ((0, 0), (1, 1), (0, 0)))             # conv zero-pad
    shifted = jnp.stack([circ_pad[:, k:k + S, :] for k in range(3)], axis=0)
    w_m = conv_w[:, :H, :].astype(f32)                             # (O=H, C=H, K=3)
    # A[j, t, o] = sum_{k,c} circ_pad[j, t+k, c] * w_m[o, c, k]
    a_mat = jnp.einsum('kjtc,ock->jto', shifted, w_m).reshape(S, S * H).astype(f32)

    w_x = conv_w[:, H:, :].astype(f32)                             # (O=H, C=H, K=3)
    wx_cat = jnp.transpose(w_x, (1, 2, 0)).reshape(H, 3 * H).astype(jnp.bfloat16)

    scale = (bn_gamma / jnp.sqrt(bn_var + eps)).astype(f32)        # (S,)
    shift = (bn_beta - bn_mean * scale).astype(f32)                # (S,)
    scale_flat = jnp.repeat(scale, H).reshape(1, S * H)
    shift_flat = (scale[:, None] * conv_b[None, :].astype(f32)
                  + shift[:, None]).reshape(1, S * H)

    # ---- data-proportional input: bf16, flattened to (B*S, H) ----
    # TODO(synk): in a real model x would already arrive as bf16; the cast here
    # is only for this self-contained demo.
    x_flat = x.reshape(B * S, H).astype(jnp.bfloat16)

    TB = _pick_batch_block(B, S)
    grid = (B // TB,)

    cost = pl.CostEstimate(
        flops=int(2 * B * S * S * H + 2 * B * S * H * 3 * H + 8 * B * S * H),
        transcendentals=int(B * S * H),
        bytes_accessed=int(B * S * H * 2 + B * S * H * 4 + S * S * H * 4
                           + 3 * H * H * 2 + 2 * S * H * 4),
    )
    block_bytes = (TB * S * H * (2 + 4) + S * S * H * 4 + 3 * H * H * 2
                   + 2 * S * H * 4)
    vmem_limit = int(min(64 * 1024 * 1024, max(4 * 1024 * 1024, 8 * block_bytes)))

    out2 = pl.pallas_call(
        _lmufft_kernel,
        out_shape=jax.ShapeDtypeStruct((B, S * H), jnp.float32),
        grid=grid,
        in_specs=[
            pl.BlockSpec((TB * S, H), lambda i: (i, 0)),    # x (bf16)
            pl.BlockSpec((S, S * H), lambda i: (0, 0)),     # folded spectral + conv m-half
            pl.BlockSpec((H, 3 * H), lambda i: (0, 0)),     # conv x-half, im2col packed
            pl.BlockSpec((1, S * H), lambda i: (0, 0)),     # fused BN scale
            pl.BlockSpec((1, S * H), lambda i: (0, 0)),     # fused conv-bias + BN shift
        ],
        out_specs=pl.BlockSpec((TB, S * H), lambda i: (i, 0)),
        compiler_params=pltpu.CompilerParams(
            dimension_semantics=("parallel",),
            vmem_limit_bytes=vmem_limit),
        cost_estimate=cost,
    )(x_flat, a_mat, wx_cat, scale_flat, shift_flat)

    return out2.reshape(B, S, H)


# --------------------------- pure-JAX reference ----------------------------- #
def lmufft_reference(x, weights_fft, conv_w, conv_b,
                     bn_gamma, bn_beta, bn_mean, bn_var, eps=1e-5):
    B, S, H = x.shape
    u = jnp.mean(x, axis=-1, keepdims=True)                  # (B, S, 1)
    fft_u = jnp.fft.rfft(u, n=S, axis=-2)                    # (B, S//2+1, 1)
    fr, fi = jnp.real(fft_u), jnp.imag(fft_u)
    wr = weights_fft[None, ..., 0]
    wi = weights_fft[None, ..., 1]
    tr = fr * wr - fi * wi
    ti = fr * wi + fi * wr
    m = jnp.fft.irfft(tr + 1j * ti, n=S, axis=-2)            # (B, S, H)
    input_h = jnp.concatenate([m, x], axis=-1)               # (B, S, 2H)
    xc = jnp.transpose(input_h, (0, 2, 1))                   # (B, 2H, S)
    hc = lax.conv_general_dilated(xc, conv_w, (1,), ((1, 1),),
                                  dimension_numbers=('NCH', 'OIH', 'NCH'))
    h = jnp.transpose(hc, (0, 2, 1)) + conv_b[None, None, :]
    scale = bn_gamma / jnp.sqrt(bn_var + eps)
    h = (h - bn_mean[None, :, None]) * scale[None, :, None] + bn_beta[None, :, None]
    return jnp.where(h > 0, h, jnp.exp(h) - 1.0)


# ----------------------------------- main ----------------------------------- #
if __name__ == "__main__":
    B, S, H = 2, 8, 32              # batch, seq_len, hidden_size
    Fbins = S // 2 + 1

    key = jax.random.PRNGKey(0)
    k1, k2, k3, k4 = jax.random.split(key, 4)
    x = jax.random.normal(k1, (B, S, H), jnp.float32)
    weights_fft = jax.random.normal(k2, (Fbins, H, 2), jnp.float32)
    conv_w = 0.1 * jax.random.normal(k3, (H, 2 * H, 3), jnp.float32)   # (O, I, K)
    conv_b = 0.1 * jax.random.normal(k4, (H,), jnp.float32)
    # BatchNorm1d(seq_len) default init (eval mode)
    bn_gamma = jnp.ones((S,), jnp.float32)
    bn_beta = jnp.zeros((S,), jnp.float32)
    bn_mean = jnp.zeros((S,), jnp.float32)
    bn_var = jnp.ones((S,), jnp.float32)

    out = lmufft_forward(x, weights_fft, conv_w, conv_b,
                         bn_gamma, bn_beta, bn_mean, bn_var)
    out = jax.block_until_ready(out)

    ref = lmufft_reference(x, weights_fft, conv_w, conv_b,
                           bn_gamma, bn_beta, bn_mean, bn_var)
    ref = jax.block_until_ready(ref)

    assert out.shape == (B, S, H)
    max_err = float(jnp.max(jnp.abs(out - ref)))
    if not (max_err < 5e-2):
        raise AssertionError(f"kernel/reference mismatch, max abs err = {max_err}")

    print("KERNEL_OK")
</pallas_src>

<mosaic_0001>
module attributes {stable_mosaic.version = 11 : i64} {
  func.func @_lmufft_kernel(%arg0: i32, %arg1: memref<16x32xbf16, #tpu.memory_space<vmem>>, %arg2: memref<8x256xf32, #tpu.memory_space<vmem>>, %arg3: memref<32x96xbf16, #tpu.memory_space<vmem>>, %arg4: memref<1x256xf32, #tpu.memory_space<vmem>>, %arg5: memref<1x256xf32, #tpu.memory_space<vmem>>, %arg6: memref<2x256xf32, #tpu.memory_space<vmem>>) attributes {dimension_semantics = [#tpu.dimension_semantics<parallel>], iteration_bounds = array<i64: 1>, scalar_prefetch = 0 : i64, scratch_operands = 0 : i64, tpu.core_type = #tpu.core_type<tc>, window_params = [{transform_indices = @transform_0, window_bounds = array<i64: 16, 32>}, {pipeline_mode = #tpu.pipeline_mode<synchronous>, transform_indices = @transform_1, window_bounds = array<i64: 8, 256>}, {pipeline_mode = #tpu.pipeline_mode<synchronous>, transform_indices = @transform_2, window_bounds = array<i64: 32, 96>}, {pipeline_mode = #tpu.pipeline_mode<synchronous>, transform_indices = @transform_3, window_bounds = array<i64: 1, 256>}, {pipeline_mode = #tpu.pipeline_mode<synchronous>, transform_indices = @transform_4, window_bounds = array<i64: 1, 256>}, {transform_indices = @transform_5, window_bounds = array<i64: 2, 256>}]} {
    %c0 = arith.constant 0 : index
    %c0_0 = arith.constant 0 : index
    %0 = vector.load %arg1[%c0, %c0_0] : memref<16x32xbf16, #tpu.memory_space<vmem>>, vector<16x32xbf16>
    %1 = arith.extf %0 : vector<16x32xbf16> to vector<16x32xf32>
    %2 = vector.shape_cast %1 : vector<16x32xf32> to vector<2x8x32xf32>
    %cst = arith.constant dense<0.000000e+00> : vector<2x8xf32>
    %3 = vector.multi_reduction <add>, %2, %cst [2] : vector<2x8x32xf32> to vector<2x8xf32>
    %cst_1 = arith.constant 3.200000e+01 : f32
    %4 = vector.broadcast %cst_1 : f32 to vector<2x8xf32>
    %5 = arith.divf %3, %4 : vector<2x8xf32>
    %c0_2 = arith.constant 0 : index
    %c0_3 = arith.constant 0 : index
    %6 = vector.load %arg2[%c0_2, %c0_3] : memref<8x256xf32, #tpu.memory_space<vmem>>, vector<8x256xf32>
    %cst_4 = arith.constant dense<0.000000e+00> : vector<2x256xf32>
    %7 = tpu.matmul %5, %6, %cst_4 {dimension_numbers = #tpu.dot_dimension_numbers<[1], [0], [0], [1], [0, 0, 1, 1], [], []>} : vector<2x8xf32>, vector<8x256xf32>, vector<2x256xf32> -> vector<2x256xf32>
    %c0_5 = arith.constant 0 : index
    %c0_6 = arith.constant 0 : index
    %8 = vector.load %arg3[%c0_5, %c0_6] : memref<32x96xbf16, #tpu.memory_space<vmem>>, vector<32x96xbf16>
    %cst_7 = arith.constant dense<0.000000e+00> : vector<16x96xf32>
    %9 = tpu.matmul %0, %8, %cst_7 {dimension_numbers = #tpu.dot_dimension_numbers<[1], [0], [0], [1], [0, 0, 1, 1], [], []>} : vector<16x32xbf16>, vector<32x96xbf16>, vector<16x96xf32> -> vector<16x96xf32>
    %10 = vector.shape_cast %9 : vector<16x96xf32> to vector<2x8x96xf32>
    %11 = vector.extract_strided_slice %10 {offsets = [0, 0, 0], sizes = [2, 8, 32], strides = [1, 1, 1]} : vector<2x8x96xf32> to vector<2x8x32xf32>
    %12 = vector.extract_strided_slice %10 {offsets = [0, 0, 32], sizes = [2, 8, 32], strides = [1, 1, 1]} : vector<2x8x96xf32> to vector<2x8x32xf32>
    %13 = vector.extract_strided_slice %10 {offsets = [0, 0, 64], sizes = [2, 8, 32], strides = [1, 1, 1]} : vector<2x8x96xf32> to vector<2x8x32xf32>
    %cst_8 = arith.constant 0.000000e+00 : f32
    %14 = vector.broadcast %cst_8 : f32 to vector<2x1x32xf32>
    %15 = vector.extract_strided_slice %11 {offsets = [0, 0, 0], sizes = [2, 7, 32], strides = [1, 1, 1]} : vector<2x8x32xf32> to vector<2x7x32xf32>
    %16 = tpu.concatenate %14, %15 in 1 : vector<2x1x32xf32>, vector<2x7x32xf32> -> vector<2x8x32xf32>
    %17 = arith.addf %12, %16 : vector<2x8x32xf32>
    %18 = vector.extract_strided_slice %13 {offsets = [0, 1, 0], sizes = [2, 7, 32], strides = [1, 1, 1]} : vector<2x8x32xf32> to vector<2x7x32xf32>
    %19 = tpu.concatenate %18, %14 in 1 : vector<2x7x32xf32>, vector<2x1x32xf32> -> vector<2x8x32xf32>
    %20 = arith.addf %17, %19 : vector<2x8x32xf32>
    %21 = vector.extract_strided_slice %20 {offsets = [0, 0, 0], sizes = [2, 1, 32], strides = [1, 1, 1]} : vector<2x8x32xf32> to vector<2x1x32xf32>
    %22 = vector.shape_cast %21 : vector<2x1x32xf32> to vector<2x32xf32>
    %23 = vector.extract_strided_slice %20 {offsets = [0, 1, 0], sizes = [2, 1, 32], strides = [1, 1, 1]} : vector<2x8x32xf32> to vector<2x1x32xf32>
    %24 = vector.shape_cast %23 : vector<2x1x32xf32> to vector<2x32xf32>
    %25 = vector.extract_strided_slice %20 {offsets = [0, 2, 0], sizes = [2, 1, 32], strides = [1, 1, 1]} : vector<2x8x32xf32> to vector<2x1x32xf32>
    %26 = vector.shape_cast %25 : vector<2x1x32xf32> to vector<2x32xf32>
    %27 = vector.extract_strided_slice %20 {offsets = [0, 3, 0], sizes = [2, 1, 32], strides = [1, 1, 1]} : vector<2x8x32xf32> to vector<2x1x32xf32>
    %28 = vector.shape_cast %27 : vector<2x1x32xf32> to vector<2x32xf32>
    %29 = vector.extract_strided_slice %20 {offsets = [0, 4, 0], sizes = [2, 1, 32], strides = [1, 1, 1]} : vector<2x8x32xf32> to vector<2x1x32xf32>
    %30 = vector.shape_cast %29 : vector<2x1x32xf32> to vector<2x32xf32>
    %31 = vector.extract_strided_slice %20 {offsets = [0, 5, 0], sizes = [2, 1, 32], strides = [1, 1, 1]} : vector<2x8x32xf32> to vector<2x1x32xf32>
    %32 = vector.shape_cast %31 : vector<2x1x32xf32> to vector<2x32xf32>
    %33 = vector.extract_strided_slice %20 {offsets = [0, 6, 0], sizes = [2, 1, 32], strides = [1, 1, 1]} : vector<2x8x32xf32> to vector<2x1x32xf32>
    %34 = vector.shape_cast %33 : vector<2x1x32xf32> to vector<2x32xf32>
    %35 = vector.extract_strided_slice %20 {offsets = [0, 7, 0], sizes = [2, 1, 32], strides = [1, 1, 1]} : vector<2x8x32xf32> to vector<2x1x32xf32>
    %36 = vector.shape_cast %35 : vector<2x1x32xf32> to vector<2x32xf32>
    %37 = tpu.concatenate %22, %24, %26, %28, %30, %32, %34, %36 in 1 : vector<2x32xf32>, vector<2x32xf32>, vector<2x32xf32>, vector<2x32xf32>, vector<2x32xf32>, vector<2x32xf32>, vector<2x32xf32>, vector<2x32xf32> -> vector<2x256xf32>
    %38 = arith.addf %7, %37 : vector<2x256xf32>
    %c0_9 = arith.constant 0 : index
    %c0_10 = arith.constant 0 : index
    %39 = vector.load %arg4[%c0_9, %c0_10] : memref<1x256xf32, #tpu.memory_space<vmem>>, vector<1x256xf32>
    %40 = vector.broadcast %39 : vector<1x256xf32> to vector<2x256xf32>
    %41 = arith.mulf %38, %40 : vector<2x256xf32>
    %c0_11 = arith.constant 0 : index
    %c0_12 = arith.constant 0 : index
    %42 = vector.load %arg5[%c0_11, %c0_12] : memref<1x256xf32, #tpu.memory_space<vmem>>, vector<1x256xf32>
    %43 = vector.broadcast %42 : vector<1x256xf32> to vector<2x256xf32>
    %44 = arith.addf %41, %43 : vector<2x256xf32>
    %cst_13 = arith.constant 0.000000e+00 : f32
    %45 = vector.broadcast %cst_13 : f32 to vector<2x256xf32>
    %46 = arith.cmpf ogt, %44, %45 : vector<2x256xf32>
    %cst_14 = arith.constant 0.000000e+00 : f32
    %47 = vector.broadcast %cst_14 : f32 to vector<2x256xf32>
    %48 = arith.minimumf %44, %47 : vector<2x256xf32>
    %49 = math.exp %48 : vector<2x256xf32>
    %cst_15 = arith.constant 1.000000e+00 : f32
    %50 = vector.broadcast %cst_15 : f32 to vector<2x256xf32>
    %51 = arith.subf %49, %50 : vector<2x256xf32>
    %52 = arith.select %46, %44, %51 : vector<2x256xi1>, vector<2x256xf32>
    %c0_16 = arith.constant 0 : index
    %c0_17 = arith.constant 0 : index
    %53 = vector.load %arg6[%c0_16, %c0_17] : memref<2x256xf32, #tpu.memory_space<vmem>>, vector<2x256xf32>
    tpu.vector_store %arg6[%c0_16, %c0_17], %52 {strides = array<i32>} : memref<2x256xf32, #tpu.memory_space<vmem>>, vector<2x256xf32>,
    return
  }
  func.func @transform_0(%arg0: i32) -> (i32, i32) {
    %c0_i32 = arith.constant 0 : i32
    %c0_i32_0 = arith.constant 0 : i32
    return %arg0, %c0_i32 : i32, i32
  }
  func.func @transform_1(%arg0: i32) -> (i32, i32) {
    %c0_i32 = arith.constant 0 : i32
    %c0_i32_0 = arith.constant 0 : i32
    %c0_i32_1 = arith.constant 0 : i32
    return %c0_i32, %c0_i32_0 : i32, i32
  }
  func.func @transform_2(%arg0: i32) -> (i32, i32) {
    %c0_i32 = arith.constant 0 : i32
    %c0_i32_0 = arith.constant 0 : i32
    %c0_i32_1 = arith.constant 0 : i32
    return %c0_i32, %c0_i32_0 : i32, i32
  }
  func.func @transform_3(%arg0: i32) -> (i32, i32) {
    %c0_i32 = arith.constant 0 : i32
    %c0_i32_0 = arith.constant 0 : i32
    %c0_i32_1 = arith.constant 0 : i32
    return %c0_i32, %c0_i32_0 : i32, i32
  }
  func.func @transform_4(%arg0: i32) -> (i32, i32) {
    %c0_i32 = arith.constant 0 : i32
    %c0_i32_0 = arith.constant 0 : i32
    %c0_i32_1 = arith.constant 0 : i32
    return %c0_i32, %c0_i32_0 : i32, i32
  }
  func.func @transform_5(%arg0: i32) -> (i32, i32) {
    %c0_i32 = arith.constant 0 : i32
    %c0_i32_0 = arith.constant 0 : i32
    return %arg0, %c0_i32 : i32, i32
  }
}

</mosaic_0001>

<llo_original>
// kernel: tpu_custom_call.1
$region0: #{tpu_custom_call.1}
  #allocation0 [shape = 'u32[]', space=smem, size = 0x4, offset = 0x4, fixed_abs, tag = 'smem constant byte address 0x4 - core index']
  #allocation1 [shape = 'u32[144,128]{1,0:T(1,128)}', space=vmem, size = 0x12000, scoped, tag = 'internal scratch']
  %s0 = inlined_call_operand.hbm [shape: bf16[16,32], index: 0, kind: input, shape index: {}]
  %s1 = inlined_call_operand.hbm [shape: f32[8,256], index: 1, kind: input, shape index: {}]
  %s2 = inlined_call_operand.hbm [shape: bf16[32,96], index: 2, kind: input, shape index: {}]
  %s3 = inlined_call_operand.vmem [shape: f32[1,256], index: 3, kind: input, shape index: {}]
  %s4 = inlined_call_operand.vmem [shape: f32[1,256], index: 4, kind: input, shape index: {}]
  %s5 = inlined_call_operand.hbm [shape: f32[2,256], index: 5, kind: output, shape index: {}]
  %s6 = sld [smem:[#allocation0]]
  $region42: #{tpu_custom_call.1} parent=0
    _
  %s8 = ssub.s32 1, %s6
  %s9 = scalar_select 0, %s8, %s6
  $region1: #{tpu_custom_call.1} parent=0
    #allocation2 [shape = 'u8[4096]{0}', space=vmem, size = 0x1000, scoped, tag = 'input window, operand 0, single buffered']
    #allocation3 [shape = 's32[1]{0}', space=sflag, size = 0x4, scoped, tag = 'scoped memory for tpu_custom_call.1']
    #allocation4 [shape = 's32[1]{0}', space=sflag, size = 0x4, scoped, tag = 'scoped memory for tpu_custom_call.1']
    #allocation5 [shape = 'u8[8192]{0}', space=vmem, size = 0x2000, scoped, tag = 'input window, operand 1, single buffered']
    #allocation6 [shape = 's32[1]{0}', space=sflag, size = 0x4, scoped, tag = 'scoped memory for tpu_custom_call.1']
    #allocation7 [shape = 'u8[8192]{0}', space=vmem, size = 0x2000, scoped, tag = 'input window, operand 2, single buffered']
    #allocation8 [shape = 'u8[2048]{0}', space=vmem, size = 0x800, scoped, tag = 'output window, operand 0, single buffered']
    %10 = vsyncpa [#allocation3], 0
    %11 = vsyncpa [#allocation6], 0
    %12 = vsyncpa [#allocation4], 0
    // Predicated region
    $region2: #{tpu_custom_call.1} parent=1 // pred_check
      _
    $region3: #{tpu_custom_call.1} parent=1 // pred_check_branch
      %14 = sbr.rel (0) target = $region5
    $region4: #{tpu_custom_call.1} parent=1 // pred_region
      %s16 = ssub.s32 128, 128
      %17 = vsyncadd [#allocation3], %s16
      %s18 = sshll.u32 [#allocation2], 4
      %s19 = int_to_ptr.vmem [resolvable:$true] %s18
      %24 = dma.hbm_to_vmem [thread:$0]  %s0, 128, %s19, [#allocation3], 64, 64, 4
    $region5: #{tpu_custom_call.1} parent=1 // pred_fallthru
      _
    // Predicated region
    $region6: #{tpu_custom_call.1} parent=1 // pred_check
      _
    $region7: #{tpu_custom_call.1} parent=1 // pred_check_branch
      %26 = sbr.rel (0) target = $region9
    $region8: #{tpu_custom_call.1} parent=1 // pred_region
      %s28 = ssub.s32 256, 256
      %29 = vsyncadd [#allocation6], %s28
      %s31 = sshll.u32 [#allocation5], 4
      %s32 = int_to_ptr.vmem [resolvable:$true] %s31
      %34 = dma.hbm_to_vmem [thread:$0]  %s1, 256, %s32, [#allocation6]
    $region9: #{tpu_custom_call.1} parent=1 // pred_fallthru
      _
    // Predicated region
    $region10: #{tpu_custom_call.1} parent=1 // pred_check
      _
    $region11: #{tpu_custom_call.1} parent=1 // pred_check_branch
      %36 = sbr.rel (0) target = $region13
    $region12: #{tpu_custom_call.1} parent=1 // pred_region
      %s38 = ssub.s32 256, 256
      %39 = vsyncadd [#allocation6], %s38
      %s40 = sshll.u32 [#allocation7], 4
      %s41 = int_to_ptr.vmem [resolvable:$true] %s40
      %46 = dma.hbm_to_vmem [thread:$0]  %s2, 256, %s41, [#allocation6], 64, 64, 4
    $region13: #{tpu_custom_call.1} parent=1 // pred_fallthru
      _
    // Predicated region
    $region14: #{tpu_custom_call.1} parent=1 // pred_check
      _
    $region15: #{tpu_custom_call.1} parent=1 // pred_check_branch
      %48 = sbr.rel (0) target = $region17
    $region16: #{tpu_custom_call.1} parent=1 // pred_region
      _
    $region17: #{tpu_custom_call.1} parent=1 // pred_fallthru
      _
    // Predicated region
    $region18: #{tpu_custom_call.1} parent=1 // pred_check
      _
    $region19: #{tpu_custom_call.1} parent=1 // pred_check_branch
      %50 = sbr.rel (0) target = $region21
    $region20: #{tpu_custom_call.1} parent=1 // pred_region
      _
    $region21: #{tpu_custom_call.1} parent=1 // pred_fallthru
      _
    // Predicated region
    $region22: #{tpu_custom_call.1} parent=1 // pred_check
      _
    $region23: #{tpu_custom_call.1} parent=1 // pred_check_branch
      %52 = sbr.rel (0) target = $region25
    $region24: #{tpu_custom_call.1} parent=1 // pred_region
      %53 = dma.done [#allocation3], 128
    $region25: #{tpu_custom_call.1} parent=1 // pred_fallthru
      _
    // Predicated region
    $region26: #{tpu_custom_call.1} parent=1 // pred_check
      _
    $region27: #{tpu_custom_call.1} parent=1 // pred_check_branch
      %55 = sbr.rel (0) target = $region29
    $region28: #{tpu_custom_call.1} parent=1 // pred_region
      %56 = dma.done [#allocation6], 256
    $region29: #{tpu_custom_call.1} parent=1 // pred_fallthru
      _
    // Predicated region
    $region30: #{tpu_custom_call.1} parent=1 // pred_check
      _
    $region31: #{tpu_custom_call.1} parent=1 // pred_check_branch
      %58 = sbr.rel (0) target = $region33
    $region32: #{tpu_custom_call.1} parent=1 // pred_region
      %59 = dma.done [#allocation6], 256
    $region33: #{tpu_custom_call.1} parent=1 // pred_fallthru
      _
    %v61 = vld [vmem:[#allocation2] sm:$0xf]
    %v62 = vld [vmem:[#allocation2 + $0x4] sm:$0xf]
    %v63 = vunpack.c.l.bf16 %v61
    %v64 = vunpack.c.l.bf16 %v62
    %vm65 = vcmask 261120
    %v66 = vsel %vm65, %v63, 0.0
    %67 = vadd.xlane.f32.xlu0 %v66
    %v68 = vpop.xlane.xlu0 %67
    %v69 = vsel %vm65, %v64, 0.0
    %70 = vadd.xlane.f32.xlu0 %v69
    %v71 = vpop.xlane.xlu0 %70
    %v72 = vrcp.pop 32.0
    %v73 = vmul.f32 %v68, %v72
    %v74 = vmul.f32 %v71, %v72
    %v75 = vld [vmem:[#allocation5] sm:$0xff]
    %v76 = vld [vmem:[#allocation5 + $0x8] sm:$0xff]
    %v77 = vld [vmem:[#allocation7] sm:$0xf]
    %v78 = vld [vmem:[#allocation7 + $0x4] sm:$0xf]
    %v79 = vld [vmem:[#allocation7 + $0x8] sm:$0xf]
    %v80 = vld [vmem:[#allocation7 + $0xc] sm:$0xf]
    %v83 = vunpack.c.l.b16 %v61
    %v84 = vunpack.c.l.b16 %v62
    %v85 = vpack.c.b16 %v84, %v83
    %v90 = vunpack.c.l.b16 %v77
    %v91 = vunpack.c.l.b16 %v78
    %v92 = vunpack.c.l.b16 %v79
    %v93 = vunpack.c.l.b16 %v80
    %v94 = vpack.c.b16 %v91, %v90
    %v95 = vpack.c.b16 %v93, %v92
    %v99 = vsel %vm65, %v85, 0
    %101 = vmatprep.subr.bf16.mxu0 0
    %102 = vmatpush1.bf16.msra.mxu0 %v94
    %103 = vmatprep.subr.bf16.mxu0 0
    %104 = vmatpush1.bf16.msra.mxu0 %v95
    %105 = vmatprep.subr.bf16.mxu0 0
    %106 = vmatpush1.bf16.msra.mxu0 0
    %107 = vmatprep.subr.bf16.mxu0 0
    %108 = vmatpush1.bf16.msra.mxu0 0
    %109 = vmatprep.subr.bf16.mxu0 0
    %110 = vmatpush1.bf16.msra.mxu0 0
    %111 = vmatprep.subr.bf16.mxu0 0
    %112 = vmatpush1.bf16.msra.mxu0 0
    %113 = vmatprep.subr.bf16.mxu0 0
    %114 = vmatpush1.bf16.msra.mxu0 0
    %115 = vmatprep.subr.bf16.mxu0 0
    %116 = vmatpush1.bf16.msra.mxu0 0
    %117 = vmatprep.subr.bf16.mxu0 0
    %118 = vmatpush1.bf16.msra.mxu0 0
    %119 = vmatprep.subr.bf16.mxu0 0
    %120 = vmatpush1.bf16.msra.mxu0 0
    %121 = vmatprep.subr.bf16.mxu0 0
    %122 = vmatpush1.bf16.msra.mxu0 0
    %123 = vmatprep.subr.bf16.mxu0 0
    %124 = vmatpush1.bf16.msra.mxu0 0
    %125 = vmatprep.subr.bf16.mxu0 0
    %126 = vmatpush1.bf16.msra.mxu0 0
    %127 = vmatprep.subr.bf16.mxu0 0
    %128 = vmatpush1.bf16.msra.mxu0 0
    %129 = vmatprep.subr.bf16.mxu0 0
    %130 = vmatpush1.bf16.msra.mxu0 0
    %131 = vmatprep.subr.bf16.mxu0 0
    %132 = vmatpush1.bf16.msra.mxu0 0
    %133 = vmatprep.mubr.bf16.mxu0 0
    %134 = vmatmul.mubr.bf16.gmra.mrb[0].mxu0 %v99
    %v135 = vpop.f32.mrb[0].mxu0
    %v136 = vadd.f32 0.0, %v135
    %v137 = vpop.f32.mrb[0].mxu0
    %v138 = vpop.f32.mrb[0].mxu0
    %v139 = vadd.f32 0.0, %v138
    %v140 = vpop.f32.mrb[0].mxu0
    %141 = vdwg.mxu0
    %v144 = vrot.slane %v136, 7
    %v145 = vrot.slane %v139, 7
    %vm148 = vcmask 1040384
    %v149 = vsel %vm148, 0.0, %v144
    %v150 = vsel %vm148, 0.0, %v145
    %153 = vrot.lane.b32.xlu0 %v149, 32
    %v154 = vpop.permute.xlu0 %153
    %155 = vrot.lane.b32.xlu0 %v150, 32
    %v156 = vpop.permute.xlu0 %155
    %v159 = vadd.f32 %v136, %v154
    %v160 = vadd.f32 %v139, %v156
    %v161 = vrot.slane %v136, 1
    %v162 = vrot.slane %v139, 1
    %vm165 = vcmask 1046528
    %v166 = vsel %vm165, %v161, 0.0
    %v167 = vsel %vm165, %v162, 0.0
    %170 = vrot.lane.b32.xlu0 %v166, 96
    %v171 = vpop.permute.xlu0 %170
    %172 = vrot.lane.b32.xlu0 %v167, 96
    %v173 = vpop.permute.xlu0 %172
    %v176 = vadd.f32 %v159, %v171
    %v177 = vadd.f32 %v160, %v173
    %v180 = vrot.slane %v177, 7
    %vm181 = vcmask 1041409
    %v182 = vsel %vm181, %v180, %v176
    %183 = vrot.lane.b32.xlu0 %v182, 96
    %v184 = vpop.permute.xlu0 %183
    %v186 = vrot.slane %v176, 1
    %v187 = vsel %vm181, %v177, %v186
    %v189 = vrot.slane %v176, 2
    %v190 = vrot.slane %v177, 1
    %v191 = vsel %vm181, %v190, %v189
    %192 = vrot.lane.b32.xlu0 %v191, 32
    %v193 = vpop.permute.xlu0 %192
    %v195 = vrot.slane %v176, 3
    %v196 = vrot.slane %v177, 2
    %v197 = vsel %vm181, %v196, %v195
    %198 = vrot.lane.b32.xlu0 %v197, 64
    %v199 = vpop.permute.xlu0 %198
    %v201 = vrot.slane %v176, 4
    %v202 = vrot.slane %v177, 3
    %v203 = vsel %vm181, %v202, %v201
    %204 = vrot.lane.b32.xlu0 %v203, 96
    %v205 = vpop.permute.xlu0 %204
    %v207 = vrot.slane %v176, 5
    %v208 = vrot.slane %v177, 4
    %v209 = vsel %vm181, %v208, %v207
    %v211 = vrot.slane %v176, 6
    %v212 = vrot.slane %v177, 5
    %v213 = vsel %vm181, %v212, %v211
    %214 = vrot.lane.b32.xlu0 %v213, 32
    %v215 = vpop.permute.xlu0 %214
    %v217 = vrot.slane %v176, 7
    %v218 = vrot.slane %v177, 6
    %v219 = vsel %vm181, %v218, %v217
    %220 = vrot.lane.b32.xlu0 %v219, 64
    %v221 = vpop.permute.xlu0 %220
    %v223 = vsel %vm65, %v184, %v187
    %vm224 = vcmask 523264
    %v225 = vsel %vm224, %v223, %v193
    %vm226 = vcmask 785408
    %v227 = vsel %vm226, %v225, %v199
    %v228 = vsel %vm65, %v205, %v209
    %v229 = vsel %vm224, %v228, %v215
    %v230 = vsel %vm226, %v229, %v221
    %v233 = vlaneseq
    %v234 = vand.u32 %v233, 127
    %v235 = vlaneseq
    %v236 = vshrl.u32 %v235, 7
    %v237 = vsub.s32 %v234, %v236
    %v238 = vrot.slane %v73, %v237
    %v239 = vlaneseq
    %v240 = vshrl.u32 %v239, 7
    %v241 = vsub.s32 %v234, %v240
    %v242 = vrot.slane %v74, %v241
    %v243 = vsel %vm181, %v242, %v238
    %vm244 = vcmask 64512
    %v245 = vsel %vm244, %v243, 0
    %247 = vmatprep.subr.mxu0 %v76
    %248 = vmatpush1.msra.mxu0 %v75
    %249 = vmatprep.subr.mxu0 0.0
    %250 = vmatpush1.msra.mxu0 0.0
    %251 = vmatprep.subr.mxu0 0.0
    %252 = vmatpush1.msra.mxu0 0.0
    %253 = vmatprep.subr.mxu0 0.0
    %254 = vmatpush1.msra.mxu0 0.0
    %255 = vmatprep.subr.mxu0 0.0
    %256 = vmatpush1.msra.mxu0 0.0
    %257 = vmatprep.subr.mxu0 0.0
    %258 = vmatpush1.msra.mxu0 0.0
    %259 = vmatprep.subr.mxu0 0.0
    %260 = vmatpush1.msra.mxu0 0.0
    %261 = vmatprep.subr.mxu0 0.0
    %262 = vmatpush1.msra.mxu0 0.0
    %263 = vmatprep.subr.mxu0 0.0
    %264 = vmatpush1.msra.mxu0 0.0
    %265 = vmatprep.subr.mxu0 0.0
    %266 = vmatpush1.msra.mxu0 0.0
    %267 = vmatprep.subr.mxu0 0.0
    %268 = vmatpush1.msra.mxu0 0.0
    %269 = vmatprep.subr.mxu0 0.0
    %270 = vmatpush1.msra.mxu0 0.0
    %271 = vmatprep.subr.mxu0 0.0
    %272 = vmatpush1.msra.mxu0 0.0
    %273 = vmatprep.subr.mxu0 0.0
    %274 = vmatpush1.msra.mxu0 0.0
    %275 = vmatprep.subr.mxu0 0.0
    %276 = vmatpush1.msra.mxu0 0.0
    %277 = vmatprep.subr.mxu0 0.0
    %278 = vmatpush1.msra.mxu0 0.0
    %279 = vmatprep.subr.mxu0 0.0
    %280 = vmatpush1.msra.mxu0 0.0
    %281 = vmatprep.subr.mxu0 0.0
    %282 = vmatpush1.msra.mxu0 0.0
    %283 = vmatprep.subr.mxu0 0.0
    %284 = vmatpush1.msra.mxu0 0.0
    %285 = vmatprep.subr.mxu0 0.0
    %286 = vmatpush1.msra.mxu0 0.0
    %287 = vmatprep.subr.mxu0 0.0
    %288 = vmatpush1.msra.mxu0 0.0
    %289 = vmatprep.subr.mxu0 0.0
    %290 = vmatpush1.msra.mxu0 0.0
    %291 = vmatprep.subr.mxu0 0.0
    %292 = vmatpush1.msra.mxu0 0.0
    %293 = vmatprep.subr.mxu0 0.0
    %294 = vmatpush1.msra.mxu0 0.0
    %295 = vmatprep.subr.mxu0 0.0
    %296 = vmatpush1.msra.mxu0 0.0
    %297 = vmatprep.subr.mxu0 0.0
    %298 = vmatpush1.msra.mxu0 0.0
    %299 = vmatprep.subr.mxu0 0.0
    %300 = vmatpush1.msra.mxu0 0.0
    %301 = vmatprep.subr.mxu0 0.0
    %302 = vmatpush1.msra.mxu0 0.0
    %303 = vmatprep.subr.mxu0 0.0
    %304 = vmatpush1.msra.mxu0 0.0
    %305 = vmatprep.subr.mxu0 0.0
    %306 = vmatpush1.msra.mxu0 0.0
    %307 = vmatprep.subr.mxu0 0.0
    %308 = vmatpush1.msra.mxu0 0.0
    %309 = vmatprep.subr.mxu0 0.0
    %310 = vmatpush1.msra.mxu0 0.0
    %311 = vmatprep.mubr.f32.mxu0 0.0
    %312 = vmatmul.mubr.f32.gmra.mrb[0].mxu0 %v245
    %v313 = vpop.f32.mrb[0].mxu0
    %v314 = vadd.f32 %v227, %v313
    %v315 = vpop.f32.mrb[0].mxu0
    %v316 = vadd.f32 %v230, %v315
    %317 = vdwg.mxu0
    %v318 = vld [vmem:[%s3] sm:$0x3]
    %v320 = vlaneseq
    %v321 = vshrl.u32 %v320, 7
    %v322 = vsub.s32 0, %v321
    %v323 = vrot.slane %v318, %v322
    %v324 = vlaneseq
    %v325 = vshrl.u32 %v324, 7
    %v326 = vsub.s32 1, %v325
    %v327 = vrot.slane %v318, %v326
    %v330 = vmul.f32 %v314, %v323
    %v331 = vmul.f32 %v316, %v327
    %v332 = vld [vmem:[%s4] sm:$0x3]
    %v334 = vlaneseq
    %v335 = vshrl.u32 %v334, 7
    %v336 = vsub.s32 0, %v335
    %v337 = vrot.slane %v332, %v336
    %v338 = vlaneseq
    %v339 = vshrl.u32 %v338, 7
    %v340 = vsub.s32 1, %v339
    %v341 = vrot.slane %v332, %v340
    %v344 = vadd.f32 %v330, %v337
    %v345 = vadd.f32 %v331, %v341
    %vm346 = vcmp.gt.f32.partialorder %v344, 0.0
    %vm347 = vcmp.gt.f32.partialorder %v345, 0.0
    %v348 = vmin.f32 %v344, 0.0
    %v349 = vmin.f32 %v345, 0.0
    %v350 = vmul.f32 %v348, 1.442695
    %v351 = vpow.pop %v350
    %v352 = vmul.f32 %v349, 1.442695
    %v353 = vpow.pop %v352
    %v354 = vsub.f32 %v351, 1.0
    %v355 = vsub.f32 %v353, 1.0
    %v356 = vsel %vm346, %v344, %v354
    %v357 = vsel %vm347, %v345, %v355
    %v360 = vcombine.low %v356, %v357
    %v362 = vunpack.c.l.s4 1983009808
    %v363 = vunpack.c.0.s8 %v362
    %v364 = vlaneseq
    %v365 = vshrl.u32 %v364, 7
    %v366 = vsub.s32 %v363, %v365
    %v367 = vrot.slane %v360, %v366
    %369 = vst [vmem:[#allocation8] sm:$0xf] %v367
    // Predicated region
    $region34: #{tpu_custom_call.1} parent=1 // pred_check
      _
    $region35: #{tpu_custom_call.1} parent=1 // pred_check_branch
      %371 = sbr.rel (0) target = $region37
    $region36: #{tpu_custom_call.1} parent=1 // pred_region
      %s373 = ssub.s32 64, 64
      %374 = vsyncadd [#allocation4], %s373
      %s376 = sshll.u32 [#allocation8], 4
      %s377 = int_to_ptr.vmem [resolvable:$true] %s376
      %379 = dma.vmem_to_hbm [thread:$0]  %s377, 64, %s5, [#allocation4]
    $region37: #{tpu_custom_call.1} parent=1 // pred_fallthru
      _
    // Predicated region
    $region38: #{tpu_custom_call.1} parent=1 // pred_check
      _
    $region39: #{tpu_custom_call.1} parent=1 // pred_check_branch
      %381 = sbr.rel (0) target = $region41
    $region40: #{tpu_custom_call.1} parent=1 // pred_region
      %382 = dma.done [#allocation4], 64
    $region41: #{tpu_custom_call.1} parent=1 // pred_fallthru
      _
    %383 = vsyncpa [#allocation3], 1
    %384 = vsyncpa [#allocation6], 1
    %385 = vsyncpa [#allocation4], 1

</llo_original>
